<compile_context>
chip_gen: v5e
topology: v5e:2x2
jax: 0.10.0
libtpu: 0.0.40
codegen_flags: <defaults>
</compile_context>

<pallas_src>
import functools

import numpy as np
import jax
import jax.numpy as jnp
from jax import lax
from jax.experimental import pallas as pl
from jax.experimental.pallas import tpu as pltpu

BN_EPS = 1e-5


# ------------------------------------------------------------------ mask prep
def mask_channels_np(mask_type, in_channels, out_channels, data_channels=3):
    mask_type = mask_type.upper()
    assert mask_type in {"A", "B"}
    in_factor = in_channels // data_channels + 1
    out_factor = out_channels // data_channels + 1
    m = np.ones((data_channels, data_channels), np.float32)
    m = np.tril(m, -1 if mask_type == "A" else 0)
    m = np.concatenate([m] * in_factor, axis=1)
    m = np.concatenate([m] * out_factor, axis=0)
    return m[:out_channels, :in_channels]


def masked_conv2d_mask(out_c, in_c, kh, kw, mask_type="B", data_channels=3):
    # Same construction as MaskedConv2d.__init__ (weight layout: O, I, KH, KW).
    mask = np.ones((out_c, in_c, kh, kw), np.float32)
    mask[:, :, kh // 2, kw // 2 + (mask_type.upper() == "B"):] = 0
    mask[:, :, kh // 2 + 1:] = 0
    mask[:, :, kh // 2, kw // 2] = mask_channels_np(mask_type, in_c, out_c, data_channels)
    return mask


# ------------------------------------------------------------------ kernel
def resnet_block_kernel(x_ref, w_ref, bn_ref, mask_ref, o_ref, *, W, Cin, Ch, taps):
    P = x_ref.shape[1]
    NT = len(taps)
    inv_n = 1.0 / P

    # Unpack the packed operands once (tiny, register-resident values).
    w_all = w_ref[...]                                   # (Cin, Cin + NT*Ch + Ch)
    bn_all = bn_ref[...]                                 # (Cin, 6)
    masks = mask_ref[...]                                # (NT, P) static border masks

    w1 = w_all[0:Ch, 0:Cin]                              # (Ch, Cin)  1x1 conv #1
    w3 = w_all[0:Cin, Cin + NT * Ch:Cin + NT * Ch + Ch]  # (Cin, Ch)  1x1 conv #2

    g1, b1 = bn_all[0:Ch, 0:1], bn_all[0:Ch, 1:2]
    g2, b2 = bn_all[0:Ch, 2:3], bn_all[0:Ch, 3:4]
    g3, b3 = bn_all[0:Cin, 4:5], bn_all[0:Cin, 5:6]

    def bn_train(v, g, b):
        # Train-mode BatchNorm over the pixel (lane) axis, single-pass stats,
        # biased variance, clamped against cancellation.  Folded into one
        # per-channel scale + shift FMA on the big tensor.
        mean = jnp.sum(v, axis=1, keepdims=True) * inv_n                # (C, 1)
        var = jnp.sum(v * v, axis=1, keepdims=True) * inv_n - mean * mean
        var = jnp.maximum(var, 0.0)
        scale = lax.rsqrt(var + BN_EPS) * g                             # EUP rsqrt
        return v * scale + (b - mean * scale)

    x = x_ref[...]                                                      # (Cin, P)

    # ReLU -> 1x1 conv (Cin -> Ch) -> BN1 -> ReLU.  (conv bias cancels in BN1)
    a = jnp.dot(w1, jnp.maximum(x, 0.0), preferred_element_type=jnp.float32)
    a = jnp.maximum(bn_train(a, g1, b1), 0.0)                           # (Ch, P)

    # 'B'-masked 3x3 conv (padding=1): only the structurally non-zero taps.
    # Each tap is a lane-axis roll of the flat (n, h, w) pixel axis (XLU) times
    # a precomputed static border mask (one VPU mul), fed into a per-tap
    # (Ch,Ch)@(Ch,P) dot and accumulated in registers — no VMEM scratch.
    h2 = None
    for t, (kh, kw) in enumerate(taps):
        dy, dx = kh - 1, kw - 1
        s = dy * W + dx                       # static source flat offset
        if s == 0:
            col = a                           # center tap: no roll, no mask
        else:
            col = pltpu.roll(a, shift=(-s) % P, axis=1) * masks[t:t + 1, :]
        w2_t = w_all[0:Ch, Cin + t * Ch:Cin + (t + 1) * Ch]             # (Ch, Ch)
        contrib = jnp.dot(w2_t, col, preferred_element_type=jnp.float32)
        h2 = contrib if h2 is None else h2 + contrib
    h2 = jnp.maximum(bn_train(h2, g2, b2), 0.0)                          # (Ch, P)

    # 1x1 conv back to Cin -> BN3 -> residual add.
    out = jnp.dot(w3, h2, preferred_element_type=jnp.float32)            # (Cin, P)
    out = bn_train(out, g3, b3)
    o_ref[...] = (out + x).astype(o_ref.dtype)                           # lane-dense store


# ------------------------------------------------------------------ wrapper
def resnet_block_pallas(x_nchw, params):
    (w1, b1, g1, be1, w2, b2, g2, be2, w3, b3, g3, be3) = params
    del b1, b2, b3  # cancelled exactly by the following train-mode BatchNorms
    N, Cin, H, W = x_nchw.shape
    Ch = w1.shape[0]
    P = N * H * W

    # Channel-major, lane-dense layout: (C, N*H*W).  (At production scale keep
    # activations in this layout between blocks to avoid these transposes.)
    x_cp = jnp.transpose(x_nchw, (1, 0, 2, 3)).reshape(Cin, P).astype(jnp.float32)

    # Apply the MaskedConv2d 'B' mask (as MaskedConv2d.forward does) and keep
    # only its non-zero spatial taps (static structure: 5 of the 9).
    full_mask = masked_conv2d_mask(Ch, Ch, 3, 3, mask_type="B", data_channels=3)
    w2m = w2 * jnp.asarray(full_mask)
    taps = tuple((kh, kw) for kh in range(3) for kw in range(3)
                 if full_mask[:, :, kh, kw].any())
    NT = len(taps)

    # --- Packed operands (in a real model, pack once, not per call). --------
    # One weight tile: [ w1 | w2 tap 0 | ... | w2 tap NT-1 | w3 ].
    w2_cols = jnp.concatenate([w2m[:, :, kh, kw] for (kh, kw) in taps], axis=1)
    top = jnp.pad(jnp.concatenate([w1, w2_cols], axis=1), ((0, Cin - Ch), (0, 0)))
    w_pack = jnp.concatenate([top, w3], axis=1).astype(jnp.float32)  # (Cin, Cin+NT*Ch+Ch)

    # One BN tile: columns [g1 b1 g2 b2 g3 b3], rows = channels (Ch rows used
    # for the first two BNs, Cin rows for the last).
    bn_pack = jnp.zeros((Cin, 6), jnp.float32)
    bn_pack = bn_pack.at[:Ch, 0].set(g1).at[:Ch, 1].set(be1)
    bn_pack = bn_pack.at[:Ch, 2].set(g2).at[:Ch, 3].set(be2)
    bn_pack = bn_pack.at[:, 4].set(g3).at[:, 5].set(be3)

    # Static (NT, P) border-validity masks for the rolled taps (host numpy).
    q = np.arange(P)
    hq = (q // W) % H
    wq = q % W
    rows = []
    for (kh, kw) in taps:
        dy, dx = kh - 1, kw - 1
        rows.append(((hq + dy >= 0) & (hq + dy < H) &
                     (wq + dx >= 0) & (wq + dx < W)).astype(np.float32))
    mask_tbl = jnp.asarray(np.stack(rows, axis=0))                    # (NT, P)

    kernel = functools.partial(resnet_block_kernel, W=W, Cin=Cin, Ch=Ch, taps=taps)
    out_flat = pl.pallas_call(
        kernel,
        out_shape=jax.ShapeDtypeStruct((Cin, P), jnp.float32),
        in_specs=[pl.BlockSpec(memory_space=pltpu.MemorySpace.VMEM)] * 4,
        out_specs=pl.BlockSpec(memory_space=pltpu.MemorySpace.VMEM),
        compiler_params=pltpu.CompilerParams(vmem_limit_bytes=32 * 1024 * 1024),
    )(x_cp, w_pack, bn_pack, mask_tbl)

    return jnp.transpose(out_flat.reshape(Cin, N, H, W), (1, 0, 2, 3))  # back to NCHW


# ------------------------------------------------------------------ reference
def resnet_block_ref(x_nchw, params):
    (w1, b1, g1, be1, w2, b2, g2, be2, w3, b3, g3, be3) = params
    x = jnp.transpose(x_nchw, (0, 2, 3, 1))  # NHWC

    def bn_train(v, g, b):
        mean = jnp.mean(v, axis=(0, 1, 2), keepdims=True)
        var = jnp.mean((v - mean) ** 2, axis=(0, 1, 2), keepdims=True)
        return (v - mean) * lax.rsqrt(var + BN_EPS) * g + b

    a = jnp.maximum(x, 0.0)
    a = jnp.einsum("nhwi,oi->nhwo", a, w1) + b1
    a = jnp.maximum(bn_train(a, g1, be1), 0.0)

    full_mask = jnp.asarray(masked_conv2d_mask(w2.shape[0], w2.shape[1], 3, 3,
                                               mask_type="B", data_channels=3))
    w2_hwio = jnp.transpose(w2 * full_mask, (2, 3, 1, 0))
    a = lax.conv_general_dilated(a, w2_hwio, (1, 1), "SAME",
                                 dimension_numbers=("NHWC", "HWIO", "NHWC")) + b2
    a = jnp.maximum(bn_train(a, g2, be2), 0.0)

    a = jnp.einsum("nhwi,oi->nhwo", a, w3) + b3
    a = bn_train(a, g3, be3)
    return jnp.transpose(a + x, (0, 3, 1, 2))


# ------------------------------------------------------------------ main
if __name__ == "__main__":
    N, Cin, H, W = 2, 8, 16, 16          # in_channels must be even (h = Cin // 2)
    Ch = Cin // 2

    key = jax.random.PRNGKey(0)
    ks = jax.random.split(key, 13)

    x = jax.random.normal(ks[0], (N, Cin, H, W), jnp.float32)

    # conv1: 1x1, Cin -> Ch   (torch weight (O, I, 1, 1) stored as (O, I))
    w1 = 0.2 * jax.random.normal(ks[1], (Ch, Cin), jnp.float32)
    b1 = 0.1 * jax.random.normal(ks[2], (Ch,), jnp.float32)
    g1 = 1.0 + 0.1 * jax.random.normal(ks[3], (Ch,), jnp.float32)
    be1 = 0.1 * jax.random.normal(ks[4], (Ch,), jnp.float32)

    # masked conv2: 3x3, Ch -> Ch, mask type 'B' (mask applied in wrapper/ref,
    # matching MaskedConv2d.forward).  Raw weight layout (O, I, KH, KW).
    w2 = 0.2 * jax.random.normal(ks[5], (Ch, Ch, 3, 3), jnp.float32)
    b2 = 0.1 * jax.random.normal(ks[6], (Ch,), jnp.float32)
    g2 = 1.0 + 0.1 * jax.random.normal(ks[7], (Ch,), jnp.float32)
    be2 = 0.1 * jax.random.normal(ks[8], (Ch,), jnp.float32)

    # conv3: 1x1, Ch -> Cin
    w3 = 0.2 * jax.random.normal(ks[9], (Cin, Ch), jnp.float32)
    b3 = 0.1 * jax.random.normal(ks[10], (Cin,), jnp.float32)
    g3 = 1.0 + 0.1 * jax.random.normal(ks[11], (Cin,), jnp.float32)
    be3 = 0.1 * jax.random.normal(ks[12], (Cin,), jnp.float32)

    params = (w1, b1, g1, be1, w2, b2, g2, be2, w3, b3, g3, be3)

    out = jax.block_until_ready(resnet_block_pallas(x, params))
    ref = jax.block_until_ready(resnet_block_ref(x, params))

    assert out.shape == (N, Cin, H, W), out.shape
    np.testing.assert_allclose(np.asarray(out), np.asarray(ref), rtol=1e-3, atol=1e-3)
    print("KERNEL_OK")
</pallas_src>

<mosaic_0001>
module attributes {stable_mosaic.version = 11 : i64} {
  func.func @resnet_block_kernel(%arg0: memref<8x512xf32, #tpu.memory_space<vmem>>, %arg1: memref<8x32xf32, #tpu.memory_space<vmem>>, %arg2: memref<8x6xf32, #tpu.memory_space<vmem>>, %arg3: memref<5x512xf32, #tpu.memory_space<vmem>>, %arg4: memref<8x512xf32, #tpu.memory_space<vmem>>) attributes {dimension_semantics = [], scalar_prefetch = 0 : i64, scratch_operands = 0 : i64, tpu.core_type = #tpu.core_type<tc>} {
    %c0 = arith.constant 0 : index
    %c0_0 = arith.constant 0 : index
    %0 = vector.load %arg1[%c0, %c0_0] : memref<8x32xf32, #tpu.memory_space<vmem>>, vector<8x32xf32>
    %c0_1 = arith.constant 0 : index
    %c0_2 = arith.constant 0 : index
    %1 = vector.load %arg2[%c0_1, %c0_2] : memref<8x6xf32, #tpu.memory_space<vmem>>, vector<8x6xf32>
    %c0_3 = arith.constant 0 : index
    %c0_4 = arith.constant 0 : index
    %2 = vector.load %arg3[%c0_3, %c0_4] : memref<5x512xf32, #tpu.memory_space<vmem>>, vector<5x512xf32>
    %3 = vector.extract_strided_slice %0 {offsets = [0, 0], sizes = [4, 8], strides = [1, 1]} : vector<8x32xf32> to vector<4x8xf32>
    %4 = vector.extract_strided_slice %0 {offsets = [0, 28], sizes = [8, 4], strides = [1, 1]} : vector<8x32xf32> to vector<8x4xf32>
    %5 = vector.extract_strided_slice %1 {offsets = [0, 0], sizes = [4, 1], strides = [1, 1]} : vector<8x6xf32> to vector<4x1xf32>
    %6 = vector.extract_strided_slice %1 {offsets = [0, 1], sizes = [4, 1], strides = [1, 1]} : vector<8x6xf32> to vector<4x1xf32>
    %7 = vector.extract_strided_slice %1 {offsets = [0, 2], sizes = [4, 1], strides = [1, 1]} : vector<8x6xf32> to vector<4x1xf32>
    %8 = vector.extract_strided_slice %1 {offsets = [0, 3], sizes = [4, 1], strides = [1, 1]} : vector<8x6xf32> to vector<4x1xf32>
    %9 = vector.extract_strided_slice %1 {offsets = [0, 4], sizes = [8, 1], strides = [1, 1]} : vector<8x6xf32> to vector<8x1xf32>
    %10 = vector.extract_strided_slice %1 {offsets = [0, 5], sizes = [8, 1], strides = [1, 1]} : vector<8x6xf32> to vector<8x1xf32>
    %c0_5 = arith.constant 0 : index
    %c0_6 = arith.constant 0 : index
    %11 = vector.load %arg0[%c0_5, %c0_6] : memref<8x512xf32, #tpu.memory_space<vmem>>, vector<8x512xf32>
    %cst = arith.constant 0.000000e+00 : f32
    %12 = vector.broadcast %cst : f32 to vector<8x512xf32>
    %13 = arith.maximumf %11, %12 : vector<8x512xf32>
    %cst_7 = arith.constant dense<0.000000e+00> : vector<4x512xf32>
    %14 = tpu.matmul %3, %13, %cst_7 {dimension_numbers = #tpu.dot_dimension_numbers<[1], [0], [0], [1], [0, 0, 1, 1], [], []>} : vector<4x8xf32>, vector<8x512xf32>, vector<4x512xf32> -> vector<4x512xf32>
    %cst_8 = arith.constant dense<0.000000e+00> : vector<4xf32>
    %15 = vector.multi_reduction <add>, %14, %cst_8 [1] : vector<4x512xf32> to vector<4xf32>
    %16 = vector.shape_cast %15 : vector<4xf32> to vector<4x1xf32>
    %cst_9 = arith.constant 0.001953125 : f32
    %17 = vector.broadcast %cst_9 : f32 to vector<4x1xf32>
    %18 = arith.mulf %16, %17 : vector<4x1xf32>
    %19 = arith.mulf %14, %14 : vector<4x512xf32>
    %cst_10 = arith.constant dense<0.000000e+00> : vector<4xf32>
    %20 = vector.multi_reduction <add>, %19, %cst_10 [1] : vector<4x512xf32> to vector<4xf32>
    %21 = vector.shape_cast %20 : vector<4xf32> to vector<4x1xf32>
    %cst_11 = arith.constant 0.001953125 : f32
    %22 = vector.broadcast %cst_11 : f32 to vector<4x1xf32>
    %23 = arith.mulf %21, %22 : vector<4x1xf32>
    %24 = arith.mulf %18, %18 : vector<4x1xf32>
    %25 = arith.subf %23, %24 : vector<4x1xf32>
    %cst_12 = arith.constant 0.000000e+00 : f32
    %26 = vector.broadcast %cst_12 : f32 to vector<4x1xf32>
    %27 = arith.maximumf %25, %26 : vector<4x1xf32>
    %cst_13 = arith.constant 9.99999974E-6 : f32
    %28 = vector.broadcast %cst_13 : f32 to vector<4x1xf32>
    %29 = arith.addf %27, %28 : vector<4x1xf32>
    %30 = math.rsqrt %29 : vector<4x1xf32>
    %31 = arith.mulf %30, %5 : vector<4x1xf32>
    %32 = vector.broadcast %31 : vector<4x1xf32> to vector<4x512xf32>
    %33 = arith.mulf %14, %32 : vector<4x512xf32>
    %34 = arith.mulf %18, %31 : vector<4x1xf32>
    %35 = arith.subf %6, %34 : vector<4x1xf32>
    %36 = vector.broadcast %35 : vector<4x1xf32> to vector<4x512xf32>
    %37 = arith.addf %33, %36 : vector<4x512xf32>
    %cst_14 = arith.constant 0.000000e+00 : f32
    %38 = vector.broadcast %cst_14 : f32 to vector<4x512xf32>
    %39 = arith.maximumf %37, %38 : vector<4x512xf32>
    %c17_i32 = arith.constant 17 : i32
    %40 = tpu.dynamic_rotate %39 by %c17_i32 dim 1 : vector<4x512xf32>, i32 -> vector<4x512xf32>
    %41 = vector.extract_strided_slice %2 {offsets = [0, 0], sizes = [1, 512], strides = [1, 1]} : vector<5x512xf32> to vector<1x512xf32>
    %42 = vector.broadcast %41 : vector<1x512xf32> to vector<4x512xf32>
    %43 = arith.mulf %40, %42 : vector<4x512xf32>
    %44 = vector.extract_strided_slice %0 {offsets = [0, 8], sizes = [4, 4], strides = [1, 1]} : vector<8x32xf32> to vector<4x4xf32>
    %cst_15 = arith.constant dense<0.000000e+00> : vector<4x512xf32>
    %45 = tpu.matmul %44, %43, %cst_15 {dimension_numbers = #tpu.dot_dimension_numbers<[1], [0], [0], [1], [0, 0, 1, 1], [], []>} : vector<4x4xf32>, vector<4x512xf32>, vector<4x512xf32> -> vector<4x512xf32>
    %c16_i32 = arith.constant 16 : i32
    %46 = tpu.dynamic_rotate %39 by %c16_i32 dim 1 : vector<4x512xf32>, i32 -> vector<4x512xf32>
    %47 = vector.extract_strided_slice %2 {offsets = [1, 0], sizes = [1, 512], strides = [1, 1]} : vector<5x512xf32> to vector<1x512xf32>
    %48 = vector.broadcast %47 : vector<1x512xf32> to vector<4x512xf32>
    %49 = arith.mulf %46, %48 : vector<4x512xf32>
    %50 = vector.extract_strided_slice %0 {offsets = [0, 12], sizes = [4, 4], strides = [1, 1]} : vector<8x32xf32> to vector<4x4xf32>
    %cst_16 = arith.constant dense<0.000000e+00> : vector<4x512xf32>
    %51 = tpu.matmul %50, %49, %cst_16 {dimension_numbers = #tpu.dot_dimension_numbers<[1], [0], [0], [1], [0, 0, 1, 1], [], []>} : vector<4x4xf32>, vector<4x512xf32>, vector<4x512xf32> -> vector<4x512xf32>
    %52 = arith.addf %45, %51 : vector<4x512xf32>
    %c15_i32 = arith.constant 15 : i32
    %53 = tpu.dynamic_rotate %39 by %c15_i32 dim 1 : vector<4x512xf32>, i32 -> vector<4x512xf32>
    %54 = vector.extract_strided_slice %2 {offsets = [2, 0], sizes = [1, 512], strides = [1, 1]} : vector<5x512xf32> to vector<1x512xf32>
    %55 = vector.broadcast %54 : vector<1x512xf32> to vector<4x512xf32>
    %56 = arith.mulf %53, %55 : vector<4x512xf32>
    %57 = vector.extract_strided_slice %0 {offsets = [0, 16], sizes = [4, 4], strides = [1, 1]} : vector<8x32xf32> to vector<4x4xf32>
    %cst_17 = arith.constant dense<0.000000e+00> : vector<4x512xf32>
    %58 = tpu.matmul %57, %56, %cst_17 {dimension_numbers = #tpu.dot_dimension_numbers<[1], [0], [0], [1], [0, 0, 1, 1], [], []>} : vector<4x4xf32>, vector<4x512xf32>, vector<4x512xf32> -> vector<4x512xf32>
    %59 = arith.addf %52, %58 : vector<4x512xf32>
    %c1_i32 = arith.constant 1 : i32
    %60 = tpu.dynamic_rotate %39 by %c1_i32 dim 1 : vector<4x512xf32>, i32 -> vector<4x512xf32>
    %61 = vector.extract_strided_slice %2 {offsets = [3, 0], sizes = [1, 512], strides = [1, 1]} : vector<5x512xf32> to vector<1x512xf32>
    %62 = vector.broadcast %61 : vector<1x512xf32> to vector<4x512xf32>
    %63 = arith.mulf %60, %62 : vector<4x512xf32>
    %64 = vector.extract_strided_slice %0 {offsets = [0, 20], sizes = [4, 4], strides = [1, 1]} : vector<8x32xf32> to vector<4x4xf32>
    %cst_18 = arith.constant dense<0.000000e+00> : vector<4x512xf32>
    %65 = tpu.matmul %64, %63, %cst_18 {dimension_numbers = #tpu.dot_dimension_numbers<[1], [0], [0], [1], [0, 0, 1, 1], [], []>} : vector<4x4xf32>, vector<4x512xf32>, vector<4x512xf32> -> vector<4x512xf32>
    %66 = arith.addf %59, %65 : vector<4x512xf32>
    %67 = vector.extract_strided_slice %0 {offsets = [0, 24], sizes = [4, 4], strides = [1, 1]} : vector<8x32xf32> to vector<4x4xf32>
    %cst_19 = arith.constant dense<0.000000e+00> : vector<4x512xf32>
    %68 = tpu.matmul %67, %39, %cst_19 {dimension_numbers = #tpu.dot_dimension_numbers<[1], [0], [0], [1], [0, 0, 1, 1], [], []>} : vector<4x4xf32>, vector<4x512xf32>, vector<4x512xf32> -> vector<4x512xf32>
    %69 = arith.addf %66, %68 : vector<4x512xf32>
    %cst_20 = arith.constant dense<0.000000e+00> : vector<4xf32>
    %70 = vector.multi_reduction <add>, %69, %cst_20 [1] : vector<4x512xf32> to vector<4xf32>
    %71 = vector.shape_cast %70 : vector<4xf32> to vector<4x1xf32>
    %cst_21 = arith.constant 0.001953125 : f32
    %72 = vector.broadcast %cst_21 : f32 to vector<4x1xf32>
    %73 = arith.mulf %71, %72 : vector<4x1xf32>
    %74 = arith.mulf %69, %69 : vector<4x512xf32>
    %cst_22 = arith.constant dense<0.000000e+00> : vector<4xf32>
    %75 = vector.multi_reduction <add>, %74, %cst_22 [1] : vector<4x512xf32> to vector<4xf32>
    %76 = vector.shape_cast %75 : vector<4xf32> to vector<4x1xf32>
    %cst_23 = arith.constant 0.001953125 : f32
    %77 = vector.broadcast %cst_23 : f32 to vector<4x1xf32>
    %78 = arith.mulf %76, %77 : vector<4x1xf32>
    %79 = arith.mulf %73, %73 : vector<4x1xf32>
    %80 = arith.subf %78, %79 : vector<4x1xf32>
    %cst_24 = arith.constant 0.000000e+00 : f32
    %81 = vector.broadcast %cst_24 : f32 to vector<4x1xf32>
    %82 = arith.maximumf %80, %81 : vector<4x1xf32>
    %cst_25 = arith.constant 9.99999974E-6 : f32
    %83 = vector.broadcast %cst_25 : f32 to vector<4x1xf32>
    %84 = arith.addf %82, %83 : vector<4x1xf32>
    %85 = math.rsqrt %84 : vector<4x1xf32>
    %86 = arith.mulf %85, %7 : vector<4x1xf32>
    %87 = vector.broadcast %86 : vector<4x1xf32> to vector<4x512xf32>
    %88 = arith.mulf %69, %87 : vector<4x512xf32>
    %89 = arith.mulf %73, %86 : vector<4x1xf32>
    %90 = arith.subf %8, %89 : vector<4x1xf32>
    %91 = vector.broadcast %90 : vector<4x1xf32> to vector<4x512xf32>
    %92 = arith.addf %88, %91 : vector<4x512xf32>
    %cst_26 = arith.constant 0.000000e+00 : f32
    %93 = vector.broadcast %cst_26 : f32 to vector<4x512xf32>
    %94 = arith.maximumf %92, %93 : vector<4x512xf32>
    %cst_27 = arith.constant dense<0.000000e+00> : vector<8x512xf32>
    %95 = tpu.matmul %4, %94, %cst_27 {dimension_numbers = #tpu.dot_dimension_numbers<[1], [0], [0], [1], [0, 0, 1, 1], [], []>} : vector<8x4xf32>, vector<4x512xf32>, vector<8x512xf32> -> vector<8x512xf32>
    %cst_28 = arith.constant dense<0.000000e+00> : vector<8xf32>
    %96 = vector.multi_reduction <add>, %95, %cst_28 [1] : vector<8x512xf32> to vector<8xf32>
    %97 = vector.shape_cast %96 : vector<8xf32> to vector<8x1xf32>
    %cst_29 = arith.constant 0.001953125 : f32
    %98 = vector.broadcast %cst_29 : f32 to vector<8x1xf32>
    %99 = arith.mulf %97, %98 : vector<8x1xf32>
    %100 = arith.mulf %95, %95 : vector<8x512xf32>
    %cst_30 = arith.constant dense<0.000000e+00> : vector<8xf32>
    %101 = vector.multi_reduction <add>, %100, %cst_30 [1] : vector<8x512xf32> to vector<8xf32>
    %102 = vector.shape_cast %101 : vector<8xf32> to vector<8x1xf32>
    %cst_31 = arith.constant 0.001953125 : f32
    %103 = vector.broadcast %cst_31 : f32 to vector<8x1xf32>
    %104 = arith.mulf %102, %103 : vector<8x1xf32>
    %105 = arith.mulf %99, %99 : vector<8x1xf32>
    %106 = arith.subf %104, %105 : vector<8x1xf32>
    %cst_32 = arith.constant 0.000000e+00 : f32
    %107 = vector.broadcast %cst_32 : f32 to vector<8x1xf32>
    %108 = arith.maximumf %106, %107 : vector<8x1xf32>
    %cst_33 = arith.constant 9.99999974E-6 : f32
    %109 = vector.broadcast %cst_33 : f32 to vector<8x1xf32>
    %110 = arith.addf %108, %109 : vector<8x1xf32>
    %111 = math.rsqrt %110 : vector<8x1xf32>
    %112 = arith.mulf %111, %9 : vector<8x1xf32>
    %113 = vector.broadcast %112 : vector<8x1xf32> to vector<8x512xf32>
    %114 = arith.mulf %95, %113 : vector<8x512xf32>
    %115 = arith.mulf %99, %112 : vector<8x1xf32>
    %116 = arith.subf %10, %115 : vector<8x1xf32>
    %117 = vector.broadcast %116 : vector<8x1xf32> to vector<8x512xf32>
    %118 = arith.addf %114, %117 : vector<8x512xf32>
    %119 = arith.addf %118, %11 : vector<8x512xf32>
    %c0_34 = arith.constant 0 : index
    %c0_35 = arith.constant 0 : index
    %120 = vector.load %arg4[%c0_34, %c0_35] : memref<8x512xf32, #tpu.memory_space<vmem>>, vector<8x512xf32>
    tpu.vector_store %arg4[%c0_34, %c0_35], %119 {strides = array<i32>} : memref<8x512xf32, #tpu.memory_space<vmem>>, vector<8x512xf32>,
    return
  }
}

</mosaic_0001>

<llo_original>
// kernel: tpu_custom_call.1
$region0: #{tpu_custom_call.1}
  #allocation0 [shape = 'u32[]', space=smem, size = 0x4, offset = 0x4, fixed_abs, tag = 'smem constant byte address 0x4 - core index']
  #allocation1 [shape = 'u32[72,128]{1,0:T(1,128)}', space=vmem, size = 0x9000, scoped, tag = 'internal scratch']
  %s0 = inlined_call_operand.hbm [shape: f32[8,512], index: 0, kind: input, shape index: {}]
  %s1 = inlined_call_operand.hbm [shape: f32[8,32], index: 1, kind: input, shape index: {}]
  %s2 = inlined_call_operand.hbm [shape: f32[8,6], index: 2, kind: input, shape index: {}]
  %s3 = inlined_call_operand.hbm [shape: f32[5,512], index: 3, kind: input, shape index: {}]
  %s4 = inlined_call_operand.hbm [shape: f32[8,512], index: 4, kind: output, shape index: {}]
  %s5 = sld [smem:[#allocation0]]
  $region42: #{tpu_custom_call.1} parent=0
    _
  %s7 = ssub.s32 1, %s5
  %s8 = scalar_select 0, %s7, %s5
  $region1: #{tpu_custom_call.1} parent=0
    #allocation2 [shape = 'u8[16384]{0}', space=vmem, size = 0x4000, scoped, tag = 'input window, operand 0, single buffered']
    #allocation3 [shape = 's32[1]{0}', space=sflag, size = 0x4, scoped, tag = 'scoped memory for tpu_custom_call.1']
    #allocation4 [shape = 's32[1]{0}', space=sflag, size = 0x4, scoped, tag = 'scoped memory for tpu_custom_call.1']
    #allocation5 [shape = 'u8[4096]{0}', space=vmem, size = 0x1000, scoped, tag = 'input window, operand 1, single buffered']
    #allocation6 [shape = 's32[1]{0}', space=sflag, size = 0x4, scoped, tag = 'scoped memory for tpu_custom_call.1']
    #allocation7 [shape = 'u8[4096]{0}', space=vmem, size = 0x1000, scoped, tag = 'input window, operand 2, single buffered']
    #allocation8 [shape = 'u8[16384]{0}', space=vmem, size = 0x4000, scoped, tag = 'input window, operand 3, single buffered']
    #allocation9 [shape = 's32[1]{0}', space=sflag, size = 0x4, scoped, tag = 'scoped memory for tpu_custom_call.1']
    #allocation10 [shape = 'u8[16384]{0}', space=vmem, size = 0x4000, scoped, tag = 'output window, operand 0, single buffered']
    %9 = vsyncpa [#allocation3], 0
    %10 = vsyncpa [#allocation6], 0
    %11 = vsyncpa [#allocation9], 0
    %12 = vsyncpa [#allocation4], 0
    // Predicated region
    $region2: #{tpu_custom_call.1} parent=1 // pred_check
      _
    $region3: #{tpu_custom_call.1} parent=1 // pred_check_branch
      %14 = sbr.rel (0) target = $region5
    $region4: #{tpu_custom_call.1} parent=1 // pred_region
      %16 = vsyncadd [#allocation3], 0
      %s18 = sshll.u32 %s0, 4
      %s19 = int_to_ptr.hbm [resolvable:$true] %s18
      %s20 = sshll.u32 [#allocation2], 4
      %s21 = int_to_ptr.vmem [resolvable:$true] %s20
      %23 = dma.hbm_to_vmem [thread:$0]  %s19, 512, %s21, [#allocation3]
    $region5: #{tpu_custom_call.1} parent=1 // pred_fallthru
      _
    // Predicated region
    $region6: #{tpu_custom_call.1} parent=1 // pred_check
      _
    $region7: #{tpu_custom_call.1} parent=1 // pred_check_branch
      %25 = sbr.rel (0) target = $region9
    $region8: #{tpu_custom_call.1} parent=1 // pred_region
      %27 = vsyncadd [#allocation6], 0
      %s29 = sshll.u32 %s1, 4
      %s30 = int_to_ptr.hbm [resolvable:$true] %s29
      %s31 = sshll.u32 [#allocation5], 4
      %s32 = int_to_ptr.vmem [resolvable:$true] %s31
      %34 = dma.hbm_to_vmem [thread:$0]  %s30, 128, %s32, [#allocation6]
    $region9: #{tpu_custom_call.1} parent=1 // pred_fallthru
      _
    // Predicated region
    $region10: #{tpu_custom_call.1} parent=1 // pred_check
      _
    $region11: #{tpu_custom_call.1} parent=1 // pred_check_branch
      %36 = sbr.rel (0) target = $region13
    $region12: #{tpu_custom_call.1} parent=1 // pred_region
      %38 = vsyncadd [#allocation6], 0
      %s40 = sshll.u32 %s2, 4
      %s41 = int_to_ptr.hbm [resolvable:$true] %s40
      %s42 = sshll.u32 [#allocation7], 4
      %s43 = int_to_ptr.vmem [resolvable:$true] %s42
      %45 = dma.hbm_to_vmem [thread:$0]  %s41, 128, %s43, [#allocation6]
    $region13: #{tpu_custom_call.1} parent=1 // pred_fallthru
      _
    // Predicated region
    $region14: #{tpu_custom_call.1} parent=1 // pred_check
      _
    $region15: #{tpu_custom_call.1} parent=1 // pred_check_branch
      %47 = sbr.rel (0) target = $region17
    $region16: #{tpu_custom_call.1} parent=1 // pred_region
      %49 = vsyncadd [#allocation9], 0
      %s51 = sshll.u32 %s3, 4
      %s52 = int_to_ptr.hbm [resolvable:$true] %s51
      %s53 = sshll.u32 [#allocation8], 4
      %s54 = int_to_ptr.vmem [resolvable:$true] %s53
      %56 = dma.hbm_to_vmem [thread:$0]  %s52, 512, %s54, [#allocation9]
    $region17: #{tpu_custom_call.1} parent=1 // pred_fallthru
      _
    // Predicated region
    $region18: #{tpu_custom_call.1} parent=1 // pred_check
      _
    $region19: #{tpu_custom_call.1} parent=1 // pred_check_branch
      %58 = sbr.rel (0) target = $region21
    $region20: #{tpu_custom_call.1} parent=1 // pred_region
      %60 = dma.done [#allocation3], 512
    $region21: #{tpu_custom_call.1} parent=1 // pred_fallthru
      _
    // Predicated region
    $region22: #{tpu_custom_call.1} parent=1 // pred_check
      _
    $region23: #{tpu_custom_call.1} parent=1 // pred_check_branch
      %62 = sbr.rel (0) target = $region25
    $region24: #{tpu_custom_call.1} parent=1 // pred_region
      %64 = dma.done [#allocation6], 128
    $region25: #{tpu_custom_call.1} parent=1 // pred_fallthru
      _
    // Predicated region
    $region26: #{tpu_custom_call.1} parent=1 // pred_check
      _
    $region27: #{tpu_custom_call.1} parent=1 // pred_check_branch
      %66 = sbr.rel (0) target = $region29
    $region28: #{tpu_custom_call.1} parent=1 // pred_region
      %68 = dma.done [#allocation6], 128
    $region29: #{tpu_custom_call.1} parent=1 // pred_fallthru
      _
    // Predicated region
    $region30: #{tpu_custom_call.1} parent=1 // pred_check
      _
    $region31: #{tpu_custom_call.1} parent=1 // pred_check_branch
      %70 = sbr.rel (0) target = $region33
    $region32: #{tpu_custom_call.1} parent=1 // pred_region
      %72 = dma.done [#allocation9], 512
    $region33: #{tpu_custom_call.1} parent=1 // pred_fallthru
      _
    %v73 = vld [vmem:[#allocation5] sm:$0xff]
    %v74 = vld [vmem:[#allocation7] sm:$0xff]
    %v75 = vld [vmem:[#allocation8] sm:$0x1f]
    %v76 = vld [vmem:[#allocation8 + $0x8] sm:$0x1f]
    %v77 = vld [vmem:[#allocation8 + $0x10] sm:$0x1f]
    %v78 = vld [vmem:[#allocation8 + $0x18] sm:$0x1f]
    %v79 = vld [vmem:[#allocation2] sm:$0xff]
    %v80 = vld [vmem:[#allocation2 + $0x8] sm:$0xff]
    %v81 = vld [vmem:[#allocation2 + $0x10] sm:$0xff]
    %v82 = vld [vmem:[#allocation2 + $0x18] sm:$0xff]
    %v83 = vmax.f32 %v79, 0.0
    %v84 = vmax.f32 %v80, 0.0
    %v85 = vmax.f32 %v81, 0.0
    %v86 = vmax.f32 %v82, 0.0
    %vm87 = vcmask 64512
    %v89 = vsel %vm87, %v73, 0
    %91 = vmatpush.msra.mxu0 0.0
    %92 = vmatpush.msra.mxu0 0.0
    %93 = vmatpush.msra.mxu0 0.0
    %94 = vmatpush.msra.mxu0 0.0
    %95 = vmatpush.msra.mxu0 0.0
    %96 = vmatpush.msra.mxu0 0.0
    %97 = vmatpush.msra.mxu0 0.0
    %98 = vmatpush.msra.mxu0 0.0
    %99 = vmatpush.msra.mxu0 0.0
    %100 = vmatpush.msra.mxu0 0.0
    %101 = vmatpush.msra.mxu0 0.0
    %102 = vmatpush.msra.mxu0 0.0
    %103 = vmatpush.msra.mxu0 0.0
    %104 = vmatpush.msra.mxu0 0.0
    %105 = vmatpush.msra.mxu0 0.0
    %106 = vmatpush.msra.mxu0 %v83
    %107 = vmatmul.f32.gmra.mxu0 %v89
    %v108 = vpop.f32.mrf.mxu0
    %v109 = vadd.f32 0.0, %v108
    %110 = vdwg.mxu0
    %111 = vmatpush.msra.mxu0 0.0
    %112 = vmatpush.msra.mxu0 0.0
    %113 = vmatpush.msra.mxu0 0.0
    %114 = vmatpush.msra.mxu0 0.0
    %115 = vmatpush.msra.mxu0 0.0
    %116 = vmatpush.msra.mxu0 0.0
    %117 = vmatpush.msra.mxu0 0.0
    %118 = vmatpush.msra.mxu0 0.0
    %119 = vmatpush.msra.mxu0 0.0
    %120 = vmatpush.msra.mxu0 0.0
    %121 = vmatpush.msra.mxu0 0.0
    %122 = vmatpush.msra.mxu0 0.0
    %123 = vmatpush.msra.mxu0 0.0
    %124 = vmatpush.msra.mxu0 0.0
    %125 = vmatpush.msra.mxu0 0.0
    %126 = vmatpush.msra.mxu0 %v84
    %127 = vmatmul.f32.gmra.mxu0 %v89
    %v128 = vpop.f32.mrf.mxu0
    %v129 = vadd.f32 0.0, %v128
    %130 = vdwg.mxu0
    %131 = vmatpush.msra.mxu0 0.0
    %132 = vmatpush.msra.mxu0 0.0
    %133 = vmatpush.msra.mxu0 0.0
    %134 = vmatpush.msra.mxu0 0.0
    %135 = vmatpush.msra.mxu0 0.0
    %136 = vmatpush.msra.mxu0 0.0
    %137 = vmatpush.msra.mxu0 0.0
    %138 = vmatpush.msra.mxu0 0.0
    %139 = vmatpush.msra.mxu0 0.0
    %140 = vmatpush.msra.mxu0 0.0
    %141 = vmatpush.msra.mxu0 0.0
    %142 = vmatpush.msra.mxu0 0.0
    %143 = vmatpush.msra.mxu0 0.0
    %144 = vmatpush.msra.mxu0 0.0
    %145 = vmatpush.msra.mxu0 0.0
    %146 = vmatpush.msra.mxu0 %v85
    %147 = vmatmul.f32.gmra.mxu0 %v89
    %v148 = vpop.f32.mrf.mxu0
    %v149 = vadd.f32 0.0, %v148
    %150 = vdwg.mxu0
    %151 = vmatpush.msra.mxu0 0.0
    %152 = vmatpush.msra.mxu0 0.0
    %153 = vmatpush.msra.mxu0 0.0
    %154 = vmatpush.msra.mxu0 0.0
    %155 = vmatpush.msra.mxu0 0.0
    %156 = vmatpush.msra.mxu0 0.0
    %157 = vmatpush.msra.mxu0 0.0
    %158 = vmatpush.msra.mxu0 0.0
    %159 = vmatpush.msra.mxu0 0.0
    %160 = vmatpush.msra.mxu0 0.0
    %161 = vmatpush.msra.mxu0 0.0
    %162 = vmatpush.msra.mxu0 0.0
    %163 = vmatpush.msra.mxu0 0.0
    %164 = vmatpush.msra.mxu0 0.0
    %165 = vmatpush.msra.mxu0 0.0
    %166 = vmatpush.msra.mxu0 %v86
    %167 = vmatmul.f32.gmra.mxu0 %v89
    %v168 = vpop.f32.mrf.mxu0
    %v169 = vadd.f32 0.0, %v168
    %170 = vdwg.mxu0
    %vm171 = vcmask 1043456
    %v172 = vsel %vm171, %v109, 0.0
    %v173 = vsel %vm171, %v129, 0.0
    %v174 = vadd.f32 %v172, %v173
    %v175 = vsel %vm171, %v149, 0.0
    %v176 = vadd.f32 %v174, %v175
    %v177 = vsel %vm171, %v169, 0.0
    %v178 = vadd.f32 %v176, %v177
    %179 = vadd.xlane.f32.xlu0 %v178
    %v180 = vpop.xlane.xlu0 %179
    %v181 = vmul.f32 %v180, 0.001953125
    %v182 = vmul.f32 %v109, %v109
    %v183 = vmul.f32 %v129, %v129
    %v184 = vmul.f32 %v149, %v149
    %v185 = vmul.f32 %v169, %v169
    %v186 = vsel %vm171, %v182, 0.0
    %v187 = vsel %vm171, %v183, 0.0
    %v188 = vadd.f32 %v186, %v187
    %v189 = vsel %vm171, %v184, 0.0
    %v190 = vadd.f32 %v188, %v189
    %v191 = vsel %vm171, %v185, 0.0
    %v192 = vadd.f32 %v190, %v191
    %193 = vadd.xlane.f32.xlu0 %v192
    %v194 = vpop.xlane.xlu0 %193
    %v195 = vmul.f32 %v194, 0.001953125
    %v196 = vmul.f32 %v181, %v181
    %v197 = vsub.f32 %v195, %v196
    %v198 = vmax.f32 %v197, 0.0
    %v199 = vadd.f32 %v198, 1e-05
    %v200 = vrsqrt.pop %v199
    %v201 = vmul.f32 %v200, %v199
    %v202 = vmul.f32 %v201, %v200
    %v203 = vmul.f32 0.5, %v202
    %v204 = vsub.f32 1.5, %v203
    %v205 = vmul.f32 %v200, %v204
    %vm206 = vweird.f32 %v199
    %vm207 = vweird.f32 %v200
    %vm208 = vmor %vm206, %vm207
    %v209 = vsel %vm208, %v200, %v205
    %v210 = vmul.f32 %v209, %v74
    %212 = vset.pattern.permute.xlu0 0
    %213 = vperm.xlu0 %212, %v210
    %v214 = vpop.permute.xlu0 %213
    %v216 = vmul.f32 %v109, %v214
    %v217 = vmul.f32 %v129, %v214
    %v218 = vmul.f32 %v149, %v214
    %v219 = vmul.f32 %v169, %v214
    %v220 = vmul.f32 %v181, %v210
    %222 = vrot.lane.b32.xlu0 %v220, 1
    %v223 = vpop.permute.xlu0 %222
    %v225 = vsub.f32 %v74, %v223
    %227 = vset.pattern.permute.xlu0 1
    %228 = vperm.xlu0 %227, %v225
    %v229 = vpop.permute.xlu0 %228
    %v231 = vadd.f32 %v216, %v229
    %v232 = vadd.f32 %v217, %v229
    %v233 = vadd.f32 %v218, %v229
    %v234 = vadd.f32 %v219, %v229
    %v235 = vmax.f32 %v231, 0.0
    %v236 = vmax.f32 %v232, 0.0
    %v237 = vmax.f32 %v233, 0.0
    %v238 = vmax.f32 %v234, 0.0
    %239 = vrot.lane.b32.xlu0 %v235, 17
    %v240 = vpop.permute.xlu0 %239
    %241 = vrot.lane.b32.xlu0 %v236, 17
    %v242 = vpop.permute.xlu0 %241
    %243 = vrot.lane.b32.xlu0 %v237, 17
    %v244 = vpop.permute.xlu0 %243
    %245 = vrot.lane.b32.xlu0 %v238, 17
    %v246 = vpop.permute.xlu0 %245
    %v247 = vlaneseq
    %v248 = vand.u32 %v247, 127
    %vm249 = vcmp.lt.s32.totalorder %v248, 17
    %v250 = vsel %vm249, %v244, %v246
    %v251 = vsel %vm249, %v242, %v244
    %v252 = vsel %vm249, %v240, %v242
    %v253 = vsel %vm249, %v246, %v240
    %v254 = vperm.slane %v75, 0
    %v255 = vperm.slane %v76, 0
    %v256 = vperm.slane %v77, 0
    %v257 = vperm.slane %v78, 0
    %v258 = vmul.f32 %v253, %v254
    %v259 = vmul.f32 %v252, %v255
    %v260 = vmul.f32 %v251, %v256
    %v261 = vmul.f32 %v250, %v257
    %262 = vrot.lane.b32.xlu0 %v235, 16
    %v263 = vpop.permute.xlu0 %262
    %264 = vrot.lane.b32.xlu0 %v236, 16
    %v265 = vpop.permute.xlu0 %264
    %266 = vrot.lane.b32.xlu0 %v237, 16
    %v267 = vpop.permute.xlu0 %266
    %268 = vrot.lane.b32.xlu0 %v238, 16
    %v269 = vpop.permute.xlu0 %268
    %vm270 = vcmp.lt.s32.totalorder %v248, 16
    %v271 = vsel %vm270, %v267, %v269
    %v272 = vsel %vm270, %v265, %v267
    %v273 = vsel %vm270, %v263, %v265
    %v274 = vsel %vm270, %v269, %v263
    %v275 = vperm.slane %v75, 1
    %v276 = vperm.slane %v76, 1
    %v277 = vperm.slane %v77, 1
    %v278 = vperm.slane %v78, 1
    %v279 = vmul.f32 %v274, %v275
    %v280 = vmul.f32 %v273, %v276
    %v281 = vmul.f32 %v272, %v277
    %v282 = vmul.f32 %v271, %v278
    %283 = vrot.lane.b32.xlu0 %v73, 116
    %v284 = vpop.permute.xlu0 %283
    %vm285 = vcmask 31744
    %v286 = vsel %vm285, %v284, 0
    %v289 = vsel %vm171, %v279, 0
    %v292 = vsel %vm171, %v280, 0
    %v295 = vsel %vm171, %v281, 0
    %v298 = vsel %vm171, %v282, 0
    %300 = vmatpush.msra.mxu0 0.0
    %301 = vmatpush.msra.mxu0 0.0
    %302 = vmatpush.msra.mxu0 0.0
    %303 = vmatpush.msra.mxu0 0.0
    %304 = vmatpush.msra.mxu0 0.0
    %305 = vmatpush.msra.mxu0 0.0
    %306 = vmatpush.msra.mxu0 0.0
    %307 = vmatpush.msra.mxu0 0.0
    %308 = vmatpush.msra.mxu0 0.0
    %309 = vmatpush.msra.mxu0 0.0
    %310 = vmatpush.msra.mxu0 0.0
    %311 = vmatpush.msra.mxu0 0.0
    %312 = vmatpush.msra.mxu0 0.0
    %313 = vmatpush.msra.mxu0 0.0
    %314 = vmatpush.msra.mxu0 0.0
    %315 = vmatpush.msra.mxu0 %v289
    %316 = vmatmul.f32.gmra.mxu0 %v286
    %v317 = vpop.f32.mrf.mxu0
    %v318 = vadd.f32 0.0, %v317
    %319 = vdwg.mxu0
    %320 = vmatpush.msra.mxu0 0.0
    %321 = vmatpush.msra.mxu0 0.0
    %322 = vmatpush.msra.mxu0 0.0
    %323 = vmatpush.msra.mxu0 0.0
    %324 = vmatpush.msra.mxu0 0.0
    %325 = vmatpush.msra.mxu0 0.0
    %326 = vmatpush.msra.mxu0 0.0
    %327 = vmatpush.msra.mxu0 0.0
    %328 = vmatpush.msra.mxu0 0.0
    %329 = vmatpush.msra.mxu0 0.0
    %330 = vmatpush.msra.mxu0 0.0
    %331 = vmatpush.msra.mxu0 0.0
    %332 = vmatpush.msra.mxu0 0.0
    %333 = vmatpush.msra.mxu0 0.0
    %334 = vmatpush.msra.mxu0 0.0
    %335 = vmatpush.msra.mxu0 %v292
    %336 = vmatmul.f32.gmra.mxu0 %v286
    %v337 = vpop.f32.mrf.mxu0
    %v338 = vadd.f32 0.0, %v337
    %339 = vdwg.mxu0
    %340 = vmatpush.msra.mxu0 0.0
    %341 = vmatpush.msra.mxu0 0.0
    %342 = vmatpush.msra.mxu0 0.0
    %343 = vmatpush.msra.mxu0 0.0
    %344 = vmatpush.msra.mxu0 0.0
    %345 = vmatpush.msra.mxu0 0.0
    %346 = vmatpush.msra.mxu0 0.0
    %347 = vmatpush.msra.mxu0 0.0
    %348 = vmatpush.msra.mxu0 0.0
    %349 = vmatpush.msra.mxu0 0.0
    %350 = vmatpush.msra.mxu0 0.0
    %351 = vmatpush.msra.mxu0 0.0
    %352 = vmatpush.msra.mxu0 0.0
    %353 = vmatpush.msra.mxu0 0.0
    %354 = vmatpush.msra.mxu0 0.0
    %355 = vmatpush.msra.mxu0 %v295
    %356 = vmatmul.f32.gmra.mxu0 %v286
    %v357 = vpop.f32.mrf.mxu0
    %v358 = vadd.f32 0.0, %v357
    %359 = vdwg.mxu0
    %360 = vmatpush.msra.mxu0 0.0
    %361 = vmatpush.msra.mxu0 0.0
    %362 = vmatpush.msra.mxu0 0.0
    %363 = vmatpush.msra.mxu0 0.0
    %364 = vmatpush.msra.mxu0 0.0
    %365 = vmatpush.msra.mxu0 0.0
    %366 = vmatpush.msra.mxu0 0.0
    %367 = vmatpush.msra.mxu0 0.0
    %368 = vmatpush.msra.mxu0 0.0
    %369 = vmatpush.msra.mxu0 0.0
    %370 = vmatpush.msra.mxu0 0.0
    %371 = vmatpush.msra.mxu0 0.0
    %372 = vmatpush.msra.mxu0 0.0
    %373 = vmatpush.msra.mxu0 0.0
    %374 = vmatpush.msra.mxu0 0.0
    %375 = vmatpush.msra.mxu0 %v298
    %376 = vmatmul.f32.gmra.mxu0 %v286
    %v377 = vpop.f32.mrf.mxu0
    %v378 = vadd.f32 0.0, %v377
    %379 = vdwg.mxu0
    %380 = vrot.lane.b32.xlu0 %v73, 120
    %v381 = vpop.permute.xlu0 %380
    %v382 = vsel %vm285, %v381, 0
    %v385 = vsel %vm171, %v258, 0
    %v388 = vsel %vm171, %v259, 0
    %v391 = vsel %vm171, %v260, 0
    %v394 = vsel %vm171, %v261, 0
    %396 = vmatpush.msra.mxu0 0.0
    %397 = vmatpush.msra.mxu0 0.0
    %398 = vmatpush.msra.mxu0 0.0
    %399 = vmatpush.msra.mxu0 0.0
    %400 = vmatpush.msra.mxu0 0.0
    %401 = vmatpush.msra.mxu0 0.0
    %402 = vmatpush.msra.mxu0 0.0
    %403 = vmatpush.msra.mxu0 0.0
    %404 = vmatpush.msra.mxu0 0.0
    %405 = vmatpush.msra.mxu0 0.0
    %406 = vmatpush.msra.mxu0 0.0
    %407 = vmatpush.msra.mxu0 0.0
    %408 = vmatpush.msra.mxu0 0.0
    %409 = vmatpush.msra.mxu0 0.0
    %410 = vmatpush.msra.mxu0 0.0
    %411 = vmatpush.msra.mxu0 %v385
    %412 = vmatmul.f32.gmra.mxu0 %v382
    %v413 = vpop.f32.mrf.mxu0
    %v414 = vadd.f32 %v318, %v413
    %415 = vdwg.mxu0
    %416 = vmatpush.msra.mxu0 0.0
    %417 = vmatpush.msra.mxu0 0.0
    %418 = vmatpush.msra.mxu0 0.0
    %419 = vmatpush.msra.mxu0 0.0
    %420 = vmatpush.msra.mxu0 0.0
    %421 = vmatpush.msra.mxu0 0.0
    %422 = vmatpush.msra.mxu0 0.0
    %423 = vmatpush.msra.mxu0 0.0
    %424 = vmatpush.msra.mxu0 0.0
    %425 = vmatpush.msra.mxu0 0.0
    %426 = vmatpush.msra.mxu0 0.0
    %427 = vmatpush.msra.mxu0 0.0
    %428 = vmatpush.msra.mxu0 0.0
    %429 = vmatpush.msra.mxu0 0.0
    %430 = vmatpush.msra.mxu0 0.0
    %431 = vmatpush.msra.mxu0 %v388
    %432 = vmatmul.f32.gmra.mxu0 %v382
    %v433 = vpop.f32.mrf.mxu0
    %v434 = vadd.f32 %v338, %v433
    %435 = vdwg.mxu0
    %436 = vmatpush.msra.mxu0 0.0
    %437 = vmatpush.msra.mxu0 0.0
    %438 = vmatpush.msra.mxu0 0.0
    %439 = vmatpush.msra.mxu0 0.0
    %440 = vmatpush.msra.mxu0 0.0
    %441 = vmatpush.msra.mxu0 0.0
    %442 = vmatpush.msra.mxu0 0.0
    %443 = vmatpush.msra.mxu0 0.0
    %444 = vmatpush.msra.mxu0 0.0
    %445 = vmatpush.msra.mxu0 0.0
    %446 = vmatpush.msra.mxu0 0.0
    %447 = vmatpush.msra.mxu0 0.0
    %448 = vmatpush.msra.mxu0 0.0
    %449 = vmatpush.msra.mxu0 0.0
    %450 = vmatpush.msra.mxu0 0.0
    %451 = vmatpush.msra.mxu0 %v391
    %452 = vmatmul.f32.gmra.mxu0 %v382
    %v453 = vpop.f32.mrf.mxu0
    %v454 = vadd.f32 %v358, %v453
    %455 = vdwg.mxu0
    %456 = vmatpush.msra.mxu0 0.0
    %457 = vmatpush.msra.mxu0 0.0
    %458 = vmatpush.msra.mxu0 0.0
    %459 = vmatpush.msra.mxu0 0.0
    %460 = vmatpush.msra.mxu0 0.0
    %461 = vmatpush.msra.mxu0 0.0
    %462 = vmatpush.msra.mxu0 0.0
    %463 = vmatpush.msra.mxu0 0.0
    %464 = vmatpush.msra.mxu0 0.0
    %465 = vmatpush.msra.mxu0 0.0
    %466 = vmatpush.msra.mxu0 0.0
    %467 = vmatpush.msra.mxu0 0.0
    %468 = vmatpush.msra.mxu0 0.0
    %469 = vmatpush.msra.mxu0 0.0
    %470 = vmatpush.msra.mxu0 0.0
    %471 = vmatpush.msra.mxu0 %v394
    %472 = vmatmul.f32.gmra.mxu0 %v382
    %v473 = vpop.f32.mrf.mxu0
    %v474 = vadd.f32 %v378, %v473
    %475 = vdwg.mxu0
    %476 = vrot.lane.b32.xlu0 %v235, 15
    %v477 = vpop.permute.xlu0 %476
    %478 = vrot.lane.b32.xlu0 %v236, 15
    %v479 = vpop.permute.xlu0 %478
    %480 = vrot.lane.b32.xlu0 %v237, 15
    %v481 = vpop.permute.xlu0 %480
    %482 = vrot.lane.b32.xlu0 %v238, 15
    %v483 = vpop.permute.xlu0 %482
    %vm484 = vcmp.lt.s32.totalorder %v248, 15
    %v485 = vsel %vm484, %v481, %v483
    %v486 = vsel %vm484, %v479, %v481
    %v487 = vsel %vm484, %v477, %v479
    %v488 = vsel %vm484, %v483, %v477
    %v489 = vperm.slane %v75, 2
    %v490 = vperm.slane %v76, 2
    %v491 = vperm.slane %v77, 2
    %v492 = vperm.slane %v78, 2
    %v493 = vmul.f32 %v488, %v489
    %v494 = vmul.f32 %v487, %v490
    %v495 = vmul.f32 %v486, %v491
    %v496 = vmul.f32 %v485, %v492
    %497 = vrot.lane.b32.xlu0 %v73, 112
    %v498 = vpop.permute.xlu0 %497
    %v499 = vsel %vm285, %v498, 0
    %v502 = vsel %vm171, %v493, 0
    %v505 = vsel %vm171, %v494, 0
    %v508 = vsel %vm171, %v495, 0
    %v511 = vsel %vm171, %v496, 0
    %513 = vmatpush.msra.mxu0 0.0
    %514 = vmatpush.msra.mxu0 0.0
    %515 = vmatpush.msra.mxu0 0.0
    %516 = vmatpush.msra.mxu0 0.0
    %517 = vmatpush.msra.mxu0 0.0
    %518 = vmatpush.msra.mxu0 0.0
    %519 = vmatpush.msra.mxu0 0.0
    %520 = vmatpush.msra.mxu0 0.0
    %521 = vmatpush.msra.mxu0 0.0
    %522 = vmatpush.msra.mxu0 0.0
    %523 = vmatpush.msra.mxu0 0.0
    %524 = vmatpush.msra.mxu0 0.0
    %525 = vmatpush.msra.mxu0 0.0
    %526 = vmatpush.msra.mxu0 0.0
    %527 = vmatpush.msra.mxu0 0.0
    %528 = vmatpush.msra.mxu0 %v502
    %529 = vmatmul.f32.gmra.mxu0 %v499
    %v530 = vpop.f32.mrf.mxu0
    %v531 = vadd.f32 0.0, %v530
    %532 = vdwg.mxu0
    %533 = vmatpush.msra.mxu0 0.0
    %534 = vmatpush.msra.mxu0 0.0
    %535 = vmatpush.msra.mxu0 0.0
    %536 = vmatpush.msra.mxu0 0.0
    %537 = vmatpush.msra.mxu0 0.0
    %538 = vmatpush.msra.mxu0 0.0
    %539 = vmatpush.msra.mxu0 0.0
    %540 = vmatpush.msra.mxu0 0.0
    %541 = vmatpush.msra.mxu0 0.0
    %542 = vmatpush.msra.mxu0 0.0
    %543 = vmatpush.msra.mxu0 0.0
    %544 = vmatpush.msra.mxu0 0.0
    %545 = vmatpush.msra.mxu0 0.0
    %546 = vmatpush.msra.mxu0 0.0
    %547 = vmatpush.msra.mxu0 0.0
    %548 = vmatpush.msra.mxu0 %v505
    %549 = vmatmul.f32.gmra.mxu0 %v499
    %v550 = vpop.f32.mrf.mxu0
    %v551 = vadd.f32 0.0, %v550
    %552 = vdwg.mxu0
    %553 = vmatpush.msra.mxu0 0.0
    %554 = vmatpush.msra.mxu0 0.0
    %555 = vmatpush.msra.mxu0 0.0
    %556 = vmatpush.msra.mxu0 0.0
    %557 = vmatpush.msra.mxu0 0.0
    %558 = vmatpush.msra.mxu0 0.0
    %559 = vmatpush.msra.mxu0 0.0
    %560 = vmatpush.msra.mxu0 0.0
    %561 = vmatpush.msra.mxu0 0.0
    %562 = vmatpush.msra.mxu0 0.0
    %563 = vmatpush.msra.mxu0 0.0
    %564 = vmatpush.msra.mxu0 0.0
    %565 = vmatpush.msra.mxu0 0.0
    %566 = vmatpush.msra.mxu0 0.0
    %567 = vmatpush.msra.mxu0 0.0
    %568 = vmatpush.msra.mxu0 %v508
    %569 = vmatmul.f32.gmra.mxu0 %v499
    %v570 = vpop.f32.mrf.mxu0
    %v571 = vadd.f32 0.0, %v570
    %572 = vdwg.mxu0
    %573 = vmatpush.msra.mxu0 0.0
    %574 = vmatpush.msra.mxu0 0.0
    %575 = vmatpush.msra.mxu0 0.0
    %576 = vmatpush.msra.mxu0 0.0
    %577 = vmatpush.msra.mxu0 0.0
    %578 = vmatpush.msra.mxu0 0.0
    %579 = vmatpush.msra.mxu0 0.0
    %580 = vmatpush.msra.mxu0 0.0
    %581 = vmatpush.msra.mxu0 0.0
    %582 = vmatpush.msra.mxu0 0.0
    %583 = vmatpush.msra.mxu0 0.0
    %584 = vmatpush.msra.mxu0 0.0
    %585 = vmatpush.msra.mxu0 0.0
    %586 = vmatpush.msra.mxu0 0.0
    %587 = vmatpush.msra.mxu0 0.0
    %588 = vmatpush.msra.mxu0 %v511
    %589 = vmatmul.f32.gmra.mxu0 %v499
    %v590 = vpop.f32.mrf.mxu0
    %v591 = vadd.f32 0.0, %v590
    %592 = vdwg.mxu0
    %v593 = vadd.f32 %v414, %v531
    %v594 = vadd.f32 %v434, %v551
    %v595 = vadd.f32 %v454, %v571
    %v596 = vadd.f32 %v474, %v591
    %597 = vrot.lane.b32.xlu0 %v235, 1
    %v598 = vpop.permute.xlu0 %597
    %599 = vrot.lane.b32.xlu0 %v236, 1
    %v600 = vpop.permute.xlu0 %599
    %601 = vrot.lane.b32.xlu0 %v237, 1
    %v602 = vpop.permute.xlu0 %601
    %603 = vrot.lane.b32.xlu0 %v238, 1
    %v604 = vpop.permute.xlu0 %603
    %vm605 = vcmp.lt.s32.totalorder %v248, 1
    %v606 = vsel %vm605, %v602, %v604
    %v607 = vsel %vm605, %v600, %v602
    %v608 = vsel %vm605, %v598, %v600
    %v609 = vsel %vm605, %v604, %v598
    %v610 = vperm.slane %v75, 3
    %v611 = vperm.slane %v76, 3
    %v612 = vperm.slane %v77, 3
    %v613 = vperm.slane %v78, 3
    %v614 = vmul.f32 %v609, %v610
    %v615 = vmul.f32 %v608, %v611
    %v616 = vmul.f32 %v607, %v612
    %v617 = vmul.f32 %v606, %v613
    %618 = vrot.lane.b32.xlu0 %v73, 108
    %v619 = vpop.permute.xlu0 %618
    %v620 = vsel %vm285, %v619, 0
    %v623 = vsel %vm171, %v614, 0
    %v626 = vsel %vm171, %v615, 0
    %v629 = vsel %vm171, %v616, 0
    %v632 = vsel %vm171, %v617, 0
    %634 = vmatpush.msra.mxu0 0.0
    %635 = vmatpush.msra.mxu0 0.0
    %636 = vmatpush.msra.mxu0 0.0
    %637 = vmatpush.msra.mxu0 0.0
    %638 = vmatpush.msra.mxu0 0.0
    %639 = vmatpush.msra.mxu0 0.0
    %640 = vmatpush.msra.mxu0 0.0
    %641 = vmatpush.msra.mxu0 0.0
    %642 = vmatpush.msra.mxu0 0.0
    %643 = vmatpush.msra.mxu0 0.0
    %644 = vmatpush.msra.mxu0 0.0
    %645 = vmatpush.msra.mxu0 0.0
    %646 = vmatpush.msra.mxu0 0.0
    %647 = vmatpush.msra.mxu0 0.0
    %648 = vmatpush.msra.mxu0 0.0
    %649 = vmatpush.msra.mxu0 %v623
    %650 = vmatmul.f32.gmra.mxu0 %v620
    %v651 = vpop.f32.mrf.mxu0
    %v652 = vadd.f32 0.0, %v651
    %653 = vdwg.mxu0
    %654 = vmatpush.msra.mxu0 0.0
    %655 = vmatpush.msra.mxu0 0.0
    %656 = vmatpush.msra.mxu0 0.0
    %657 = vmatpush.msra.mxu0 0.0
    %658 = vmatpush.msra.mxu0 0.0
    %659 = vmatpush.msra.mxu0 0.0
    %660 = vmatpush.msra.mxu0 0.0
    %661 = vmatpush.msra.mxu0 0.0
    %662 = vmatpush.msra.mxu0 0.0
    %663 = vmatpush.msra.mxu0 0.0
    %664 = vmatpush.msra.mxu0 0.0
    %665 = vmatpush.msra.mxu0 0.0
    %666 = vmatpush.msra.mxu0 0.0
    %667 = vmatpush.msra.mxu0 0.0
    %668 = vmatpush.msra.mxu0 0.0
    %669 = vmatpush.msra.mxu0 %v626
    %670 = vmatmul.f32.gmra.mxu0 %v620
    %v671 = vpop.f32.mrf.mxu0
    %v672 = vadd.f32 0.0, %v671
    %673 = vdwg.mxu0
    %674 = vmatpush.msra.mxu0 0.0
    %675 = vmatpush.msra.mxu0 0.0
    %676 = vmatpush.msra.mxu0 0.0
    %677 = vmatpush.msra.mxu0 0.0
    %678 = vmatpush.msra.mxu0 0.0
    %679 = vmatpush.msra.mxu0 0.0
    %680 = vmatpush.msra.mxu0 0.0
    %681 = vmatpush.msra.mxu0 0.0
    %682 = vmatpush.msra.mxu0 0.0
    %683 = vmatpush.msra.mxu0 0.0
    %684 = vmatpush.msra.mxu0 0.0
    %685 = vmatpush.msra.mxu0 0.0
    %686 = vmatpush.msra.mxu0 0.0
    %687 = vmatpush.msra.mxu0 0.0
    %688 = vmatpush.msra.mxu0 0.0
    %689 = vmatpush.msra.mxu0 %v629
    %690 = vmatmul.f32.gmra.mxu0 %v620
    %v691 = vpop.f32.mrf.mxu0
    %v692 = vadd.f32 0.0, %v691
    %693 = vdwg.mxu0
    %694 = vmatpush.msra.mxu0 0.0
    %695 = vmatpush.msra.mxu0 0.0
    %696 = vmatpush.msra.mxu0 0.0
    %697 = vmatpush.msra.mxu0 0.0
    %698 = vmatpush.msra.mxu0 0.0
    %699 = vmatpush.msra.mxu0 0.0
    %700 = vmatpush.msra.mxu0 0.0
    %701 = vmatpush.msra.mxu0 0.0
    %702 = vmatpush.msra.mxu0 0.0
    %703 = vmatpush.msra.mxu0 0.0
    %704 = vmatpush.msra.mxu0 0.0
    %705 = vmatpush.msra.mxu0 0.0
    %706 = vmatpush.msra.mxu0 0.0
    %707 = vmatpush.msra.mxu0 0.0
    %708 = vmatpush.msra.mxu0 0.0
    %709 = vmatpush.msra.mxu0 %v632
    %710 = vmatmul.f32.gmra.mxu0 %v620
    %v711 = vpop.f32.mrf.mxu0
    %v712 = vadd.f32 0.0, %v711
    %713 = vdwg.mxu0
    %v714 = vadd.f32 %v593, %v652
    %v715 = vadd.f32 %v594, %v672
    %v716 = vadd.f32 %v595, %v692
    %v717 = vadd.f32 %v596, %v712
    %718 = vrot.lane.b32.xlu0 %v73, 104
    %v719 = vpop.permute.xlu0 %718
    %v720 = vsel %vm285, %v719, 0
    %v723 = vsel %vm171, %v235, 0
    %v726 = vsel %vm171, %v236, 0
    %v729 = vsel %vm171, %v237, 0
    %v732 = vsel %vm171, %v238, 0
    %734 = vmatpush.msra.mxu0 0.0
    %735 = vmatpush.msra.mxu0 0.0
    %736 = vmatpush.msra.mxu0 0.0
    %737 = vmatpush.msra.mxu0 0.0
    %738 = vmatpush.msra.mxu0 0.0
    %739 = vmatpush.msra.mxu0 0.0
    %740 = vmatpush.msra.mxu0 0.0
    %741 = vmatpush.msra.mxu0 0.0
    %742 = vmatpush.msra.mxu0 0.0
    %743 = vmatpush.msra.mxu0 0.0
    %744 = vmatpush.msra.mxu0 0.0
    %745 = vmatpush.msra.mxu0 0.0
    %746 = vmatpush.msra.mxu0 0.0
    %747 = vmatpush.msra.mxu0 0.0
    %748 = vmatpush.msra.mxu0 0.0
    %749 = vmatpush.msra.mxu0 %v723
    %750 = vmatmul.f32.gmra.mxu0 %v720
    %v751 = vpop.f32.mrf.mxu0
    %v752 = vadd.f32 0.0, %v751
    %753 = vdwg.mxu0
    %754 = vmatpush.msra.mxu0 0.0
    %755 = vmatpush.msra.mxu0 0.0
    %756 = vmatpush.msra.mxu0 0.0
    %757 = vmatpush.msra.mxu0 0.0
    %758 = vmatpush.msra.mxu0 0.0
    %759 = vmatpush.msra.mxu0 0.0
    %760 = vmatpush.msra.mxu0 0.0
    %761 = vmatpush.msra.mxu0 0.0
    %762 = vmatpush.msra.mxu0 0.0
    %763 = vmatpush.msra.mxu0 0.0
    %764 = vmatpush.msra.mxu0 0.0
    %765 = vmatpush.msra.mxu0 0.0
    %766 = vmatpush.msra.mxu0 0.0
    %767 = vmatpush.msra.mxu0 0.0
    %768 = vmatpush.msra.mxu0 0.0
    %769 = vmatpush.msra.mxu0 %v726
    %770 = vmatmul.f32.gmra.mxu0 %v720
    %v771 = vpop.f32.mrf.mxu0
    %v772 = vadd.f32 0.0, %v771
    %773 = vdwg.mxu0
    %774 = vmatpush.msra.mxu0 0.0
    %775 = vmatpush.msra.mxu0 0.0
    %776 = vmatpush.msra.mxu0 0.0
    %777 = vmatpush.msra.mxu0 0.0
    %778 = vmatpush.msra.mxu0 0.0
    %779 = vmatpush.msra.mxu0 0.0
    %780 = vmatpush.msra.mxu0 0.0
    %781 = vmatpush.msra.mxu0 0.0
    %782 = vmatpush.msra.mxu0 0.0
    %783 = vmatpush.msra.mxu0 0.0
    %784 = vmatpush.msra.mxu0 0.0
    %785 = vmatpush.msra.mxu0 0.0
    %786 = vmatpush.msra.mxu0 0.0
    %787 = vmatpush.msra.mxu0 0.0
    %788 = vmatpush.msra.mxu0 0.0
    %789 = vmatpush.msra.mxu0 %v729
    %790 = vmatmul.f32.gmra.mxu0 %v720
    %v791 = vpop.f32.mrf.mxu0
    %v792 = vadd.f32 0.0, %v791
    %793 = vdwg.mxu0
    %794 = vmatpush.msra.mxu0 0.0
    %795 = vmatpush.msra.mxu0 0.0
    %796 = vmatpush.msra.mxu0 0.0
    %797 = vmatpush.msra.mxu0 0.0
    %798 = vmatpush.msra.mxu0 0.0
    %799 = vmatpush.msra.mxu0 0.0
    %800 = vmatpush.msra.mxu0 0.0
    %801 = vmatpush.msra.mxu0 0.0
    %802 = vmatpush.msra.mxu0 0.0
    %803 = vmatpush.msra.mxu0 0.0
    %804 = vmatpush.msra.mxu0 0.0
    %805 = vmatpush.msra.mxu0 0.0
    %806 = vmatpush.msra.mxu0 0.0
    %807 = vmatpush.msra.mxu0 0.0
    %808 = vmatpush.msra.mxu0 0.0
    %809 = vmatpush.msra.mxu0 %v732
    %810 = vmatmul.f32.gmra.mxu0 %v720
    %v811 = vpop.f32.mrf.mxu0
    %v812 = vadd.f32 0.0, %v811
    %813 = vdwg.mxu0
    %v814 = vadd.f32 %v714, %v752
    %v815 = vadd.f32 %v715, %v772
    %v816 = vadd.f32 %v716, %v792
    %v817 = vadd.f32 %v717, %v812
    %v818 = vsel %vm171, %v814, 0.0
    %v819 = vsel %vm171, %v815, 0.0
    %v820 = vadd.f32 %v818, %v819
    %v821 = vsel %vm171, %v816, 0.0
    %v822 = vadd.f32 %v820, %v821
    %v823 = vsel %vm171, %v817, 0.0
    %v824 = vadd.f32 %v822, %v823
    %825 = vadd.xlane.f32.xlu0 %v824
    %v826 = vpop.xlane.xlu0 %825
    %v827 = vmul.f32 %v826, 0.001953125
    %v828 = vmul.f32 %v814, %v814
    %v829 = vmul.f32 %v815, %v815
    %v830 = vmul.f32 %v816, %v816
    %v831 = vmul.f32 %v817, %v817
    %v832 = vsel %vm171, %v828, 0.0
    %v833 = vsel %vm171, %v829, 0.0
    %v834 = vadd.f32 %v832, %v833
    %v835 = vsel %vm171, %v830, 0.0
    %v836 = vadd.f32 %v834, %v835
    %v837 = vsel %vm171, %v831, 0.0
    %v838 = vadd.f32 %v836, %v837
    %839 = vadd.xlane.f32.xlu0 %v838
    %v840 = vpop.xlane.xlu0 %839
    %v841 = vmul.f32 %v840, 0.001953125
    %v842 = vmul.f32 %v827, %v827
    %v843 = vsub.f32 %v841, %v842
    %v844 = vmax.f32 %v843, 0.0
    %v845 = vadd.f32 %v844, 1e-05
    %v846 = vrsqrt.pop %v845
    %v847 = vmul.f32 %v846, %v845
    %v848 = vmul.f32 %v847, %v846
    %v849 = vmul.f32 0.5, %v848
    %v850 = vsub.f32 1.5, %v849
    %v851 = vmul.f32 %v846, %v850
    %vm852 = vweird.f32 %v845
    %vm853 = vweird.f32 %v846
    %vm854 = vmor %vm852, %vm853
    %v855 = vsel %vm854, %v846, %v851
    %v856 = vmul.f32 %v855, %v74
    %858 = vset.pattern.permute.xlu0 2
    %859 = vperm.xlu0 %858, %v856
    %v860 = vpop.permute.xlu0 %859
    %v862 = vmul.f32 %v814, %v860
    %v863 = vmul.f32 %v815, %v860
    %v864 = vmul.f32 %v816, %v860
    %v865 = vmul.f32 %v817, %v860
    %v866 = vmul.f32 %v827, %v856
    %868 = vrot.lane.b32.xlu0 %v866, 1
    %v869 = vpop.permute.xlu0 %868
    %v871 = vsub.f32 %v74, %v869
    %873 = vset.pattern.permute.xlu0 3
    %874 = vperm.xlu0 %873, %v871
    %v875 = vpop.permute.xlu0 %874
    %v877 = vadd.f32 %v862, %v875
    %v878 = vadd.f32 %v863, %v875
    %v879 = vadd.f32 %v864, %v875
    %v880 = vadd.f32 %v865, %v875
    %v881 = vmax.f32 %v877, 0.0
    %v882 = vmax.f32 %v878, 0.0
    %v883 = vmax.f32 %v879, 0.0
    %v884 = vmax.f32 %v880, 0.0
    %885 = vrot.lane.b32.xlu0 %v73, 100
    %v886 = vpop.permute.xlu0 %885
    %v887 = vsel %vm285, %v886, 0
    %v890 = vsel %vm171, %v881, 0
    %v893 = vsel %vm171, %v882, 0
    %v896 = vsel %vm171, %v883, 0
    %v899 = vsel %vm171, %v884, 0
    %901 = vmatpush.msra.mxu0 0.0
    %902 = vmatpush.msra.mxu0 0.0
    %903 = vmatpush.msra.mxu0 0.0
    %904 = vmatpush.msra.mxu0 0.0
    %905 = vmatpush.msra.mxu0 0.0
    %906 = vmatpush.msra.mxu0 0.0
    %907 = vmatpush.msra.mxu0 0.0
    %908 = vmatpush.msra.mxu0 0.0
    %909 = vmatpush.msra.mxu0 0.0
    %910 = vmatpush.msra.mxu0 0.0
    %911 = vmatpush.msra.mxu0 0.0
    %912 = vmatpush.msra.mxu0 0.0
    %913 = vmatpush.msra.mxu0 0.0
    %914 = vmatpush.msra.mxu0 0.0
    %915 = vmatpush.msra.mxu0 0.0
    %916 = vmatpush.msra.mxu0 %v890
    %917 = vmatmul.f32.gmra.mxu0 %v887
    %v918 = vpop.f32.mrf.mxu0
    %v919 = vadd.f32 0.0, %v918
    %920 = vdwg.mxu0
    %921 = vmatpush.msra.mxu0 0.0
    %922 = vmatpush.msra.mxu0 0.0
    %923 = vmatpush.msra.mxu0 0.0
    %924 = vmatpush.msra.mxu0 0.0
    %925 = vmatpush.msra.mxu0 0.0
    %926 = vmatpush.msra.mxu0 0.0
    %927 = vmatpush.msra.mxu0 0.0
    %928 = vmatpush.msra.mxu0 0.0
    %929 = vmatpush.msra.mxu0 0.0
    %930 = vmatpush.msra.mxu0 0.0
    %931 = vmatpush.msra.mxu0 0.0
    %932 = vmatpush.msra.mxu0 0.0
    %933 = vmatpush.msra.mxu0 0.0
    %934 = vmatpush.msra.mxu0 0.0
    %935 = vmatpush.msra.mxu0 0.0
    %936 = vmatpush.msra.mxu0 %v893
    %937 = vmatmul.f32.gmra.mxu0 %v887
    %v938 = vpop.f32.mrf.mxu0
    %v939 = vadd.f32 0.0, %v938
    %940 = vdwg.mxu0
    %941 = vmatpush.msra.mxu0 0.0
    %942 = vmatpush.msra.mxu0 0.0
    %943 = vmatpush.msra.mxu0 0.0
    %944 = vmatpush.msra.mxu0 0.0
    %945 = vmatpush.msra.mxu0 0.0
    %946 = vmatpush.msra.mxu0 0.0
    %947 = vmatpush.msra.mxu0 0.0
    %948 = vmatpush.msra.mxu0 0.0
    %949 = vmatpush.msra.mxu0 0.0
    %950 = vmatpush.msra.mxu0 0.0
    %951 = vmatpush.msra.mxu0 0.0
    %952 = vmatpush.msra.mxu0 0.0
    %953 = vmatpush.msra.mxu0 0.0
    %954 = vmatpush.msra.mxu0 0.0
    %955 = vmatpush.msra.mxu0 0.0
    %956 = vmatpush.msra.mxu0 %v896
    %957 = vmatmul.f32.gmra.mxu0 %v887
    %v958 = vpop.f32.mrf.mxu0
    %v959 = vadd.f32 0.0, %v958
    %960 = vdwg.mxu0
    %961 = vmatpush.msra.mxu0 0.0
    %962 = vmatpush.msra.mxu0 0.0
    %963 = vmatpush.msra.mxu0 0.0
    %964 = vmatpush.msra.mxu0 0.0
    %965 = vmatpush.msra.mxu0 0.0
    %966 = vmatpush.msra.mxu0 0.0
    %967 = vmatpush.msra.mxu0 0.0
    %968 = vmatpush.msra.mxu0 0.0
    %969 = vmatpush.msra.mxu0 0.0
    %970 = vmatpush.msra.mxu0 0.0
    %971 = vmatpush.msra.mxu0 0.0
    %972 = vmatpush.msra.mxu0 0.0
    %973 = vmatpush.msra.mxu0 0.0
    %974 = vmatpush.msra.mxu0 0.0
    %975 = vmatpush.msra.mxu0 0.0
    %976 = vmatpush.msra.mxu0 %v899
    %977 = vmatmul.f32.gmra.mxu0 %v887
    %v978 = vpop.f32.mrf.mxu0
    %v979 = vadd.f32 0.0, %v978
    %980 = vdwg.mxu0
    %v981 = vadd.f32 %v919, %v939
    %v982 = vadd.f32 %v981, %v959
    %v983 = vadd.f32 %v982, %v979
    %984 = vadd.xlane.f32.xlu0 %v983
    %v985 = vpop.xlane.xlu0 %984
    %v986 = vmul.f32 %v985, 0.001953125
    %v987 = vmul.f32 %v919, %v919
    %v988 = vmul.f32 %v939, %v939
    %v989 = vmul.f32 %v959, %v959
    %v990 = vmul.f32 %v979, %v979
    %v991 = vadd.f32 %v987, %v988
    %v992 = vadd.f32 %v991, %v989
    %v993 = vadd.f32 %v992, %v990
    %994 = vadd.xlane.f32.xlu0 %v993
    %v995 = vpop.xlane.xlu0 %994
    %v996 = vmul.f32 %v995, 0.001953125
    %v997 = vmul.f32 %v986, %v986
    %v998 = vsub.f32 %v996, %v997
    %v999 = vmax.f32 %v998, 0.0
    %v1000 = vadd.f32 %v999, 1e-05
    %v1001 = vrsqrt.pop %v1000
    %v1002 = vmul.f32 %v1001, %v1000
    %v1003 = vmul.f32 %v1002, %v1001
    %v1004 = vmul.f32 0.5, %v1003
    %v1005 = vsub.f32 1.5, %v1004
    %v1006 = vmul.f32 %v1001, %v1005
    %vm1007 = vweird.f32 %v1000
    %vm1008 = vweird.f32 %v1001
    %vm1009 = vmor %vm1007, %vm1008
    %v1010 = vsel %vm1009, %v1001, %v1006
    %v1011 = vmul.f32 %v1010, %v74
    %1013 = vset.pattern.permute.xlu0 4
    %1014 = vperm.xlu0 %1013, %v1011
    %v1015 = vpop.permute.xlu0 %1014
    %v1017 = vmul.f32 %v919, %v1015
    %v1018 = vmul.f32 %v939, %v1015
    %v1019 = vmul.f32 %v959, %v1015
    %v1020 = vmul.f32 %v979, %v1015
    %v1021 = vmul.f32 %v986, %v1011
    %1023 = vrot.lane.b32.xlu0 %v1021, 1
    %v1024 = vpop.permute.xlu0 %1023
    %v1026 = vsub.f32 %v74, %v1024
    %1028 = vset.pattern.permute.xlu0 5
    %1029 = vperm.xlu0 %1028, %v1026
    %v1030 = vpop.permute.xlu0 %1029
    %v1032 = vadd.f32 %v1017, %v1030
    %v1033 = vadd.f32 %v1018, %v1030
    %v1034 = vadd.f32 %v1019, %v1030
    %v1035 = vadd.f32 %v1020, %v1030
    %v1036 = vadd.f32 %v1032, %v79
    %v1037 = vadd.f32 %v1033, %v80
    %v1038 = vadd.f32 %v1034, %v81
    %v1039 = vadd.f32 %v1035, %v82
    %1040 = vst [vmem:[#allocation10] sm:$0xff] %v1036
    %1041 = vst [vmem:[#allocation10 + $0x8] sm:$0xff] %v1037
    %1042 = vst [vmem:[#allocation10 + $0x10] sm:$0xff] %v1038
    %1043 = vst [vmem:[#allocation10 + $0x18] sm:$0xff] %v1039
    // Predicated region
    $region34: #{tpu_custom_call.1} parent=1 // pred_check
      _
    $region35: #{tpu_custom_call.1} parent=1 // pred_check_branch
      %1045 = sbr.rel (0) target = $region37
    $region36: #{tpu_custom_call.1} parent=1 // pred_region
      %1047 = vsyncadd [#allocation4], 0
      %s1049 = sshll.u32 [#allocation10], 4
      %s1050 = int_to_ptr.vmem [resolvable:$true] %s1049
      %s1051 = sshll.u32 %s4, 4
      %s1052 = int_to_ptr.hbm [resolvable:$true] %s1051
      %1054 = dma.vmem_to_hbm [thread:$0]  %s1050, 512, %s1052, [#allocation4]
    $region37: #{tpu_custom_call.1} parent=1 // pred_fallthru
      _
    // Predicated region
    $region38: #{tpu_custom_call.1} parent=1 // pred_check
      _
    $region39: #{tpu_custom_call.1} parent=1 // pred_check_branch
      %1056 = sbr.rel (0) target = $region41
    $region40: #{tpu_custom_call.1} parent=1 // pred_region
      %1058 = dma.done [#allocation4], 512
    $region41: #{tpu_custom_call.1} parent=1 // pred_fallthru
      _
    %1059 = vsyncpa [#allocation3], 1
    %1060 = vsyncpa [#allocation6], 1
    %1061 = vsyncpa [#allocation9], 1
    %1062 = vsyncpa [#allocation4], 1

</llo_original>
